<compile_context>
chip_gen: v6e
topology: v6e:2x2x1
jax: 0.10.0
libtpu: 0.0.40
codegen_flags: <defaults>
</compile_context>

<pallas_src>
import functools

import jax
import jax.numpy as jnp
from jax.experimental import pallas as pl
from jax.experimental.pallas import tpu as pltpu


# ----------------------------- config -------------------------------------- #
class ModelArgs:
    def __init__(self, dim, n_layers, head_dim, hidden_dim, n_heads,
                 n_kv_heads, norm_eps, vocab_size, rope_theta=10000.0):
        self.dim = dim
        self.n_layers = n_layers
        self.head_dim = head_dim
        self.hidden_dim = hidden_dim
        self.n_heads = n_heads
        self.n_kv_heads = n_kv_heads
        self.norm_eps = norm_eps
        self.vocab_size = vocab_size
        self.rope_theta = rope_theta


# --------------------------- tiling helper ---------------------------------- #
def _tile(n, cap, align):
    """Largest tile <= cap that divides n and is a multiple of `align`.
    Falls back to the full dim (single block) if no aligned divisor exists."""
    if n <= cap:
        return n
    t = (cap // align) * align
    while t >= align:
        if n % t == 0:
            return t
        t -= align
    return n


# --------------------------- Pallas kernels -------------------------------- #
# (1) fused RMSNorm + matmul:  o = rmsnorm(x) @ W      (full-K blocks, N-tiled)
def _norm_matmul_kernel(eps, x_ref, nw_ref, w_ref, o_ref):
    x = x_ref[...].astype(jnp.float32)                       # (tm, K)
    var = jnp.mean(x * x, axis=-1, keepdims=True)
    xn = (x * jax.lax.rsqrt(var + eps)) * nw_ref[...]        # (1,K) broadcast
    o_ref[...] = jnp.dot(xn.astype(w_ref.dtype), w_ref[...],
                         preferred_element_type=jnp.float32).astype(o_ref.dtype)


def norm_matmul(x, norm_w, w, eps, *, tm_cap=256, tn_cap=512):
    """x: (M, K), norm_w: (K,), w: (K, N) -> rmsnorm(x) @ w, shape (M, N)."""
    M, K = x.shape
    N = w.shape[1]
    tm = _tile(M, tm_cap, 8)
    tn = _tile(N, tn_cap, 128)
    return pl.pallas_call(
        functools.partial(_norm_matmul_kernel, eps),
        grid=(M // tm, N // tn),
        in_specs=[pl.BlockSpec((tm, K), lambda i, j: (i, 0)),
                  pl.BlockSpec((1, K), lambda i, j: (0, 0)),
                  pl.BlockSpec((K, tn), lambda i, j: (0, j))],
        out_specs=pl.BlockSpec((tm, tn), lambda i, j: (i, j)),
        out_shape=jax.ShapeDtypeStruct((M, N), x.dtype),
        compiler_params=pltpu.CompilerParams(
            dimension_semantics=("parallel", "parallel")),
    )(x, norm_w.reshape(1, K), w)


# (2) K-tiled matmul with fused residual:  o = res + x @ W
def _matmul_residual_kernel(x_ref, w_ref, r_ref, o_ref, acc_ref):
    kstep = pl.program_id(2)

    @pl.when(kstep == 0)
    def _():
        acc_ref[...] = jnp.zeros_like(acc_ref)

    acc_ref[...] += jnp.dot(x_ref[...], w_ref[...],
                            preferred_element_type=jnp.float32)

    @pl.when(kstep == pl.num_programs(2) - 1)
    def _():
        o_ref[...] = (r_ref[...].astype(jnp.float32)
                      + acc_ref[...]).astype(o_ref.dtype)


def matmul_residual(x, w, res, *, tm_cap=256, tn_cap=512, tk_cap=512):
    """x: (M, K), w: (K, N), res: (M, N) -> res + x @ w."""
    M, K = x.shape
    N = w.shape[1]
    tm = _tile(M, tm_cap, 8)
    tn = _tile(N, tn_cap, 128)
    tk = _tile(K, tk_cap, 128)
    return pl.pallas_call(
        _matmul_residual_kernel,
        grid=(M // tm, N // tn, K // tk),
        in_specs=[pl.BlockSpec((tm, tk), lambda i, j, k: (i, k)),
                  pl.BlockSpec((tk, tn), lambda i, j, k: (k, j)),
                  pl.BlockSpec((tm, tn), lambda i, j, k: (i, j))],
        out_specs=pl.BlockSpec((tm, tn), lambda i, j, k: (i, j)),
        out_shape=jax.ShapeDtypeStruct((M, N), x.dtype),
        scratch_shapes=[pltpu.VMEM((tm, tn), jnp.float32)],
        compiler_params=pltpu.CompilerParams(
            dimension_semantics=("parallel", "parallel", "arbitrary")),
    )(x, w, res)


# (3) flash-style attention with GQA sharing via grouping (no K/V repeat).
#     inputs are grouped: q (G, Mq, Dh) where G = B*n_kv_heads and the Mq rows
#     of a group are the rep query heads that share that KV head; k/v (G, Nk, Dh).
def _flash_attn_kernel(scale, q_ref, k_ref, v_ref, o_ref, m_sc, l_sc, acc_sc):
    ki = pl.program_id(2)

    @pl.when(ki == 0)
    def _():
        m_sc[...] = jnp.full_like(m_sc, -jnp.inf)
        l_sc[...] = jnp.zeros_like(l_sc)
        acc_sc[...] = jnp.zeros_like(acc_sc)

    q = q_ref[0].astype(jnp.float32) * scale                 # (tq, Dh)
    k = k_ref[0].astype(jnp.float32)                         # (tkv, Dh)
    v = v_ref[0]                                             # (tkv, Dh)
    # s = q @ k^T  (contract the head dim, no explicit transpose)
    s = jax.lax.dot_general(q, k, (((1,), (1,)), ((), ())),
                            preferred_element_type=jnp.float32)   # (tq, tkv)
    m_prev = m_sc[...]
    m_new = jnp.maximum(m_prev, jnp.max(s, axis=-1, keepdims=True))
    alpha = jnp.exp(m_prev - m_new)
    p = jnp.exp(s - m_new)
    l_sc[...] = alpha * l_sc[...] + jnp.sum(p, axis=-1, keepdims=True)
    acc_sc[...] = alpha * acc_sc[...] + jnp.dot(
        p.astype(v.dtype), v, preferred_element_type=jnp.float32)
    m_sc[...] = m_new

    @pl.when(ki == pl.num_programs(2) - 1)
    def _():
        o_ref[0] = (acc_sc[...] / l_sc[...]).astype(o_ref.dtype)


def flash_attention(q, k, v, scale, *, tq_cap=256, tkv_cap=512):
    """q: (G, Mq, Dh), k/v: (G, Nk, Dh) -> (G, Mq, Dh). Non-causal (matches ref)."""
    G, Mq, Dh = q.shape
    Nk = k.shape[1]
    tq = _tile(Mq, tq_cap, 8)
    tkv = _tile(Nk, tkv_cap, 128)
    q_spec = pl.BlockSpec((1, tq, Dh), lambda g, qi, ki: (g, qi, 0))
    kv_spec = pl.BlockSpec((1, tkv, Dh), lambda g, qi, ki: (g, ki, 0))
    return pl.pallas_call(
        functools.partial(_flash_attn_kernel, scale),
        grid=(G, Mq // tq, Nk // tkv),
        in_specs=[q_spec, kv_spec, kv_spec],
        out_specs=q_spec,
        out_shape=jax.ShapeDtypeStruct((G, Mq, Dh), q.dtype),
        scratch_shapes=[pltpu.VMEM((tq, 1), jnp.float32),
                        pltpu.VMEM((tq, 1), jnp.float32),
                        pltpu.VMEM((tq, Dh), jnp.float32)],
        compiler_params=pltpu.CompilerParams(
            dimension_semantics=("parallel", "parallel", "arbitrary")),
    )(q, k, v)


# (4) fused RMSNorm + SwiGLU FFN + residual, tiled over the hidden dim.
def _ffn_kernel(eps, x_ref, nw_ref, w1_ref, w3_ref, w2_ref, o_ref, acc_ref):
    hstep = pl.program_id(1)

    @pl.when(hstep == 0)
    def _():
        acc_ref[...] = jnp.zeros_like(acc_ref)

    x = x_ref[...].astype(jnp.float32)                       # (tm, D), resident
    var = jnp.mean(x * x, axis=-1, keepdims=True)
    xn = (x * jax.lax.rsqrt(var + eps)) * nw_ref[...]
    a = jnp.dot(xn.astype(w1_ref.dtype), w1_ref[...],
                preferred_element_type=jnp.float32)          # (tm, th)
    b = jnp.dot(xn.astype(w3_ref.dtype), w3_ref[...],
                preferred_element_type=jnp.float32)
    g = (a * jax.lax.logistic(a)) * b                        # silu(a) * b
    acc_ref[...] += jnp.dot(g.astype(w2_ref.dtype), w2_ref[...],
                            preferred_element_type=jnp.float32)

    @pl.when(hstep == pl.num_programs(1) - 1)
    def _():
        o_ref[...] = (x + acc_ref[...]).astype(o_ref.dtype)  # residual add


def ffn_norm_residual(x, norm_w, w1, w3, w2, eps, *, tm_cap=256, th_cap=512):
    """x: (M, D) -> x + swiglu(rmsnorm(x)) @ w2, shape (M, D)."""
    M, D = x.shape
    H = w1.shape[1]
    tm = _tile(M, tm_cap, 8)
    th = _tile(H, th_cap, 128)
    return pl.pallas_call(
        functools.partial(_ffn_kernel, eps),
        grid=(M // tm, H // th),
        in_specs=[pl.BlockSpec((tm, D), lambda i, h: (i, 0)),
                  pl.BlockSpec((1, D), lambda i, h: (0, 0)),
                  pl.BlockSpec((D, th), lambda i, h: (0, h)),
                  pl.BlockSpec((D, th), lambda i, h: (0, h)),
                  pl.BlockSpec((th, D), lambda i, h: (h, 0))],
        out_specs=pl.BlockSpec((tm, D), lambda i, h: (i, 0)),
        out_shape=jax.ShapeDtypeStruct((M, D), x.dtype),
        scratch_shapes=[pltpu.VMEM((tm, D), jnp.float32)],
        compiler_params=pltpu.CompilerParams(
            dimension_semantics=("parallel", "arbitrary")),
    )(x, norm_w.reshape(1, D), w1, w3, w2)


# ------------------------------- glue --------------------------------------- #
def rope_tables(seq_len, head_dim, base, offset=0):
    """cos/sin tables (L, D), computed ONCE per forward (hoisted out of layers)."""
    inv_freq = 1.0 / (base ** (jnp.arange(0, head_dim, 2, dtype=jnp.float32) / head_dim))
    t = jnp.arange(offset, offset + seq_len, dtype=jnp.float32)
    freqs = jnp.einsum('i,j->ij', t, inv_freq)               # (L, D/2)
    emb = jnp.concatenate([freqs, freqs], axis=-1)           # (L, D)
    return jnp.cos(emb), jnp.sin(emb)


def apply_rope(x, cos, sin):
    """x: (B, H, L, D). Exactly mirrors the reference interleaved rotation."""
    rot = jnp.stack([-x[..., 1::2], x[..., 0::2]], axis=-1).reshape(x.shape)
    return x * cos + rot * sin
    # TODO(synk): fuse RoPE into the attention kernel via pltpu.roll + select.


def rope(x, head_dim, base, offset=0):
    """Per-call RoPE (used only by the pure-JAX reference)."""
    L = x.shape[-2]
    cos, sin = rope_tables(L, head_dim, base, offset)
    return apply_rope(x, cos, sin)


def init_params(key, args):
    def lin(k, fan_in, fan_out):
        return (jax.random.normal(k, (fan_in, fan_out), jnp.float32) / jnp.sqrt(fan_in))

    keys = jax.random.split(key, 2 + args.n_layers)
    params = {
        "tok_emb": 0.02 * jax.random.normal(keys[0], (args.vocab_size, args.dim), jnp.float32),
        "norm_w": jnp.ones((args.dim,), jnp.float32),
        "w_out": lin(keys[1], args.dim, args.vocab_size),
        "layers": [],
    }
    for li in range(args.n_layers):
        lk = jax.random.split(keys[2 + li], 7)
        params["layers"].append({
            "attn_norm": jnp.ones((args.dim,), jnp.float32),
            "ffn_norm": jnp.ones((args.dim,), jnp.float32),
            "wq": lin(lk[0], args.dim, args.n_heads * args.head_dim),
            "wk": lin(lk[1], args.dim, args.n_kv_heads * args.head_dim),
            "wv": lin(lk[2], args.dim, args.n_kv_heads * args.head_dim),
            "wo": lin(lk[3], args.n_heads * args.head_dim, args.dim),
            "w1": lin(lk[4], args.dim, args.hidden_dim),
            "w3": lin(lk[5], args.dim, args.hidden_dim),
            "w2": lin(lk[6], args.hidden_dim, args.dim),
        })
    return params


def transformer_block(p, x, cos, sin, args):
    B, L, D = x.shape
    nh, nkv, hd = args.n_heads, args.n_kv_heads, args.head_dim
    rep = nh // nkv
    M = B * L
    xf = x.reshape(M, D)

    # --- fused RMSNorm + QKV projection (one pallas_call, xn never hits HBM) ---
    # (under jit the concat is a one-time constant fold; store pre-fused at load
    #  time for a real checkpoint)
    wqkv = jnp.concatenate([p["wq"], p["wk"], p["wv"]], axis=1)
    qkv = norm_matmul(xf, p["attn_norm"], wqkv, args.norm_eps)
    q_sz, kv_sz = nh * hd, nkv * hd
    q = qkv[:, :q_sz].reshape(B, L, nh, hd).transpose(0, 2, 1, 3)          # (B,nh,L,hd)
    k = qkv[:, q_sz:q_sz + kv_sz].reshape(B, L, nkv, hd).transpose(0, 2, 1, 3)
    v = qkv[:, q_sz + kv_sz:].reshape(B, L, nkv, hd).transpose(0, 2, 1, 3)
    # TODO(synk): remove the head transposes by writing QKV in (B,H,L,hd) layout.

    # RoPE applied to K at n_kv_heads (before any GQA expansion; none is ever
    # materialized -- query heads are grouped onto their shared KV head below).
    q = apply_rope(q, cos, sin)
    k = apply_rope(k, cos, sin)

    # --- flash attention, GQA via grouping (pure reshapes, no jnp.repeat) -----
    scale = float(hd) ** -0.5
    qg = q.reshape(B, nkv, rep, L, hd).reshape(B * nkv, rep * L, hd)
    kg = k.reshape(B * nkv, L, hd)
    vg = v.reshape(B * nkv, L, hd)
    og = flash_attention(qg, kg, vg, scale)
    o = og.reshape(B, nkv, rep, L, hd).reshape(B, nh, L, hd)
    o = o.transpose(0, 2, 1, 3).reshape(M, nh * hd)

    # --- wo projection fused with residual add --------------------------------
    h = matmul_residual(o, p["wo"], xf)

    # --- fused RMSNorm + SwiGLU FFN + residual ---------------------------------
    out = ffn_norm_residual(h, p["ffn_norm"], p["w1"], p["w3"], p["w2"], args.norm_eps)
    return out.reshape(B, L, D)


def mistral_forward(params, tokens, args):
    B, L = tokens.shape
    h = params["tok_emb"][tokens]                            # embedding gather (glue)
    cos, sin = rope_tables(L, args.head_dim, args.rope_theta)   # hoisted: once per forward
    for lp in params["layers"]:
        h = transformer_block(lp, h, cos, sin, args)
    hf = h.reshape(B * L, args.dim)
    # final RMSNorm fused into the N-tiled (vocab) logits matmul
    logits = norm_matmul(hf, params["norm_w"], params["w_out"], args.norm_eps)
    return logits.reshape(B, L, args.vocab_size)
    # TODO(synk): KV-cache path (incremental decode) not implemented; this covers cache=None.


# --------------------------- pure-JAX reference ----------------------------- #
def ref_forward(params, tokens, args):
    eps = args.norm_eps

    def rms(x, w):
        return x / jnp.sqrt(jnp.mean(x * x, axis=-1, keepdims=True) + eps) * w

    B, L = tokens.shape
    nh, nkv, hd = args.n_heads, args.n_kv_heads, args.head_dim
    h = params["tok_emb"][tokens]
    for p in params["layers"]:
        xn = rms(h, p["attn_norm"])
        q = (xn @ p["wq"]).reshape(B, L, nh, hd).transpose(0, 2, 1, 3)
        k = (xn @ p["wk"]).reshape(B, L, nkv, hd).transpose(0, 2, 1, 3)
        v = (xn @ p["wv"]).reshape(B, L, nkv, hd).transpose(0, 2, 1, 3)
        rep = nh // nkv
        k = jnp.repeat(k, rep, axis=1)
        v = jnp.repeat(v, rep, axis=1)
        q = rope(q, hd, args.rope_theta)
        k = rope(k, hd, args.rope_theta)
        scores = jnp.einsum('bhid,bhjd->bhij', q * (float(hd) ** -0.5), k)
        scores = jax.nn.softmax(scores, axis=-1)
        o = jnp.einsum('bhij,bhjd->bhid', scores, v)
        o = o.transpose(0, 2, 1, 3).reshape(B, L, nh * hd)
        h = h + o @ p["wo"]
        hn = rms(h, p["ffn_norm"])
        h = h + (jax.nn.silu(hn @ p["w1"]) * (hn @ p["w3"])) @ p["w2"]
    h = rms(h, params["norm_w"])
    return h @ params["w_out"]


# --------------------------------- main ------------------------------------- #
if __name__ == "__main__":
    args = ModelArgs(dim=64, n_layers=2, head_dim=16, hidden_dim=128,
                     n_heads=4, n_kv_heads=2, norm_eps=1e-5,
                     vocab_size=128, rope_theta=10000.0)

    key = jax.random.PRNGKey(0)
    pkey, tkey = jax.random.split(key)
    params = init_params(pkey, args)

    B, L = 2, 8
    tokens = jax.random.randint(tkey, (B, L), 0, args.vocab_size, dtype=jnp.int32)

    logits = mistral_forward(params, tokens, args)
    logits = jax.block_until_ready(logits)

    ref = jax.block_until_ready(ref_forward(params, tokens, args))
    assert logits.shape == (B, L, args.vocab_size)
    assert jnp.allclose(logits, ref, rtol=1e-3, atol=1e-3), "mismatch vs pure-JAX reference"

    print("KERNEL_OK")
</pallas_src>

<mosaic_0001>
module attributes {stable_mosaic.version = 11 : i64} {
  func.func @_norm_matmul_kernel(%arg0: i32, %arg1: i32, %arg2: memref<16x64xf32, #tpu.memory_space<vmem>>, %arg3: memref<1x64xf32, #tpu.memory_space<vmem>>, %arg4: memref<64x128xf32, #tpu.memory_space<vmem>>, %arg5: memref<16x128xf32, #tpu.memory_space<vmem>>) attributes {dimension_semantics = [#tpu.dimension_semantics<parallel>, #tpu.dimension_semantics<parallel>], iteration_bounds = array<i64: 1, 1>, scalar_prefetch = 0 : i64, scratch_operands = 0 : i64, tpu.core_type = #tpu.core_type<tc>, window_params = [{transform_indices = @transform_0, window_bounds = array<i64: 16, 64>}, {pipeline_mode = #tpu.pipeline_mode<synchronous>, transform_indices = @transform_1, window_bounds = array<i64: 1, 64>}, {transform_indices = @transform_2, window_bounds = array<i64: 64, 128>}, {transform_indices = @transform_3, window_bounds = array<i64: 16, 128>}]} {
    %c0 = arith.constant 0 : index
    %c0_0 = arith.constant 0 : index
    %0 = vector.load %arg2[%c0, %c0_0] : memref<16x64xf32, #tpu.memory_space<vmem>>, vector<16x64xf32>
    %1 = arith.mulf %0, %0 : vector<16x64xf32>
    %cst = arith.constant dense<0.000000e+00> : vector<16xf32>
    %2 = vector.multi_reduction <add>, %1, %cst [1] : vector<16x64xf32> to vector<16xf32>
    %3 = vector.shape_cast %2 : vector<16xf32> to vector<16x1xf32>
    %cst_1 = arith.constant 6.400000e+01 : f32
    %4 = vector.broadcast %cst_1 : f32 to vector<16x1xf32>
    %5 = arith.divf %3, %4 : vector<16x1xf32>
    %cst_2 = arith.constant 9.99999974E-6 : f32
    %6 = vector.broadcast %cst_2 : f32 to vector<16x1xf32>
    %7 = arith.addf %5, %6 : vector<16x1xf32>
    %8 = math.rsqrt %7 : vector<16x1xf32>
    %9 = vector.broadcast %8 : vector<16x1xf32> to vector<16x64xf32>
    %10 = arith.mulf %0, %9 : vector<16x64xf32>
    %c0_3 = arith.constant 0 : index
    %c0_4 = arith.constant 0 : index
    %11 = vector.load %arg3[%c0_3, %c0_4] : memref<1x64xf32, #tpu.memory_space<vmem>>, vector<1x64xf32>
    %12 = vector.broadcast %11 : vector<1x64xf32> to vector<16x64xf32>
    %13 = arith.mulf %10, %12 : vector<16x64xf32>
    %c0_5 = arith.constant 0 : index
    %c0_6 = arith.constant 0 : index
    %14 = vector.load %arg4[%c0_5, %c0_6] : memref<64x128xf32, #tpu.memory_space<vmem>>, vector<64x128xf32>
    %cst_7 = arith.constant dense<0.000000e+00> : vector<16x128xf32>
    %15 = tpu.matmul %13, %14, %cst_7 {dimension_numbers = #tpu.dot_dimension_numbers<[1], [0], [0], [1], [0, 0, 1, 1], [], []>} : vector<16x64xf32>, vector<64x128xf32>, vector<16x128xf32> -> vector<16x128xf32>
    %c0_8 = arith.constant 0 : index
    %c0_9 = arith.constant 0 : index
    %16 = vector.load %arg5[%c0_8, %c0_9] : memref<16x128xf32, #tpu.memory_space<vmem>>, vector<16x128xf32>
    tpu.vector_store %arg5[%c0_8, %c0_9], %15 {strides = array<i32>} : memref<16x128xf32, #tpu.memory_space<vmem>>, vector<16x128xf32>,
    return
  }
  func.func @transform_0(%arg0: i32, %arg1: i32) -> (i32, i32) {
    %c0_i32 = arith.constant 0 : i32
    %c0_i32_0 = arith.constant 0 : i32
    return %arg0, %c0_i32 : i32, i32
  }
  func.func @transform_1(%arg0: i32, %arg1: i32) -> (i32, i32) {
    %c0_i32 = arith.constant 0 : i32
    %c0_i32_0 = arith.constant 0 : i32
    %c0_i32_1 = arith.constant 0 : i32
    return %c0_i32, %c0_i32_0 : i32, i32
  }
  func.func @transform_2(%arg0: i32, %arg1: i32) -> (i32, i32) {
    %c0_i32 = arith.constant 0 : i32
    %c0_i32_0 = arith.constant 0 : i32
    return %c0_i32, %arg1 : i32, i32
  }
  func.func @transform_3(%arg0: i32, %arg1: i32) -> (i32, i32) {
    %c0_i32 = arith.constant 0 : i32
    return %arg0, %arg1 : i32, i32
  }
}

</mosaic_0001>

<llo_original>
// kernel: tpu_custom_call.1
$region0: #{tpu_custom_call.1}
  #allocation0 [shape = 'u32[]', space=smem, size = 0x4, offset = 0x4, fixed_abs, tag = 'smem constant byte address 0x4 - core index']
  #allocation1 [shape = 'u32[144,128]{1,0:T(1,128)}', space=vmem, size = 0x12000, scoped, tag = 'internal scratch']
  %s0 = inlined_call_operand.hbm [shape: f32[16,64], index: 0, kind: input, shape index: {}]
  %s1 = inlined_call_operand.vmem [shape: f32[1,64], index: 1, kind: input, shape index: {}]
  %s2 = inlined_call_operand.hbm [shape: f32[64,128], index: 2, kind: input, shape index: {}]
  %s3 = inlined_call_operand.hbm [shape: f32[16,128], index: 3, kind: output, shape index: {}]
  %s4 = sld [smem:[#allocation0]]
  $region30: #{tpu_custom_call.1} parent=0
    _
  %s6 = ssub.s32 1, %s4
  %s7 = scalar_select 0, %s6, %s4
  $region1: #{tpu_custom_call.1} parent=0
    #allocation2 [shape = 'u8[8192]{0}', space=vmem, size = 0x2000, scoped, tag = 'input window, operand 0, single buffered']
    #allocation3 [shape = 's32[1]{0}', space=sflag, size = 0x4, scoped, tag = 'scoped memory for tpu_custom_call.1']
    #allocation4 [shape = 's32[1]{0}', space=sflag, size = 0x4, scoped, tag = 'scoped memory for tpu_custom_call.1']
    #allocation5 [shape = 'u8[32768]{0}', space=vmem, size = 0x8000, scoped, tag = 'input window, operand 2, single buffered']
    #allocation6 [shape = 's32[1]{0}', space=sflag, size = 0x4, scoped, tag = 'scoped memory for tpu_custom_call.1']
    #allocation7 [shape = 'u8[8192]{0}', space=vmem, size = 0x2000, scoped, tag = 'output window, operand 0, single buffered']
    %8 = vsyncpa [#allocation3], 0
    %9 = vsyncpa [#allocation6], 0
    %10 = vsyncpa [#allocation4], 0
    // Predicated region
    $region2: #{tpu_custom_call.1} parent=1 // pred_check
      _
    $region3: #{tpu_custom_call.1} parent=1 // pred_check_branch
      %12 = sbr.rel (0) target = $region5
    $region4: #{tpu_custom_call.1} parent=1 // pred_region
      %s14 = ssub.s32 256, 256
      %15 = vsyncadd [#allocation3], %s14
      %s16 = sshll.u32 [#allocation2], 4
      %s17 = int_to_ptr.vmem [resolvable:$true] %s16
      %22 = dma.hbm_to_vmem [thread:$0]  %s0, 256, %s17, [#allocation3], 128, 128, 8
    $region5: #{tpu_custom_call.1} parent=1 // pred_fallthru
      _
    // Predicated region
    $region6: #{tpu_custom_call.1} parent=1 // pred_check
      _
    $region7: #{tpu_custom_call.1} parent=1 // pred_check_branch
      %24 = sbr.rel (0) target = $region9
    $region8: #{tpu_custom_call.1} parent=1 // pred_region
      _
    $region9: #{tpu_custom_call.1} parent=1 // pred_fallthru
      _
    // Predicated region
    $region10: #{tpu_custom_call.1} parent=1 // pred_check
      _
    $region11: #{tpu_custom_call.1} parent=1 // pred_check_branch
      %26 = sbr.rel (0) target = $region13
    $region12: #{tpu_custom_call.1} parent=1 // pred_region
      %s28 = ssub.s32 1024, 1024
      %29 = vsyncadd [#allocation6], %s28
      %s30 = sshll.u32 [#allocation5], 4
      %s31 = int_to_ptr.vmem [resolvable:$true] %s30
      %36 = dma.hbm_to_vmem [thread:$0]  %s2, 1024, %s31, [#allocation6], 128, 128, 8
    $region13: #{tpu_custom_call.1} parent=1 // pred_fallthru
      _
    // Predicated region
    $region14: #{tpu_custom_call.1} parent=1 // pred_check
      _
    $region15: #{tpu_custom_call.1} parent=1 // pred_check_branch
      %38 = sbr.rel (0) target = $region17
    $region16: #{tpu_custom_call.1} parent=1 // pred_region
      %39 = dma.done [#allocation3], 256
    $region17: #{tpu_custom_call.1} parent=1 // pred_fallthru
      _
    // Predicated region
    $region18: #{tpu_custom_call.1} parent=1 // pred_check
      _
    $region19: #{tpu_custom_call.1} parent=1 // pred_check_branch
      %41 = sbr.rel (0) target = $region21
    $region20: #{tpu_custom_call.1} parent=1 // pred_region
      %42 = dma.done [#allocation6], 1024
    $region21: #{tpu_custom_call.1} parent=1 // pred_fallthru
      _
    %v43 = vld [vmem:[#allocation2] sm:$0xff]
    %v44 = vld [vmem:[#allocation2 + $0x8] sm:$0xff]
    %v45 = vmul.f32 %v43, %v43
    %v46 = vmul.f32 %v44, %v44
    %vm47 = vcmask 523264
    %v48 = vsel %vm47, %v45, 0.0
    %49 = vadd.xlane.f32.xlu0 %v48
    %v50 = vpop.xlane.xlu0 %49
    %v51 = vsel %vm47, %v46, 0.0
    %52 = vadd.xlane.f32.xlu0 %v51
    %v53 = vpop.xlane.xlu0 %52
    %v54 = vrcp.pop 64.0
    %v55 = vmul.f32 %v50, %v54
    %v56 = vmul.f32 %v53, %v54
    %v57 = vadd.f32 %v55, 1e-05
    %v58 = vadd.f32 %v56, 1e-05
    %v59 = vrsqrt.pop %v57
    %v60 = vrsqrt.pop %v58
    %v61 = vmul.f32 %v43, %v59
    %v62 = vmul.f32 %v44, %v60
    %v63 = vld [vmem:[%s1] sm:$0x1]
    %v65 = vlaneseq
    %v66 = vshrl.u32 %v65, 7
    %v67 = vsub.s32 0, %v66
    %v68 = vrot.slane %v63, %v67
    %v70 = vmul.f32 %v61, %v68
    %v71 = vmul.f32 %v62, %v68
    %v72 = vld [vmem:[#allocation5] sm:$0xff]
    %v73 = vld [vmem:[#allocation5 + $0x8] sm:$0xff]
    %v74 = vld [vmem:[#allocation5 + $0x10] sm:$0xff]
    %v75 = vld [vmem:[#allocation5 + $0x18] sm:$0xff]
    %v76 = vld [vmem:[#allocation5 + $0x20] sm:$0xff]
    %v77 = vld [vmem:[#allocation5 + $0x28] sm:$0xff]
    %v78 = vld [vmem:[#allocation5 + $0x30] sm:$0xff]
    %v79 = vld [vmem:[#allocation5 + $0x38] sm:$0xff]
    %v81 = vsel %vm47, %v70, 0
    %v84 = vsel %vm47, %v71, 0
    %86 = vmatprep.subr.mxu0 0.0
    %87 = vmatpush1.msra.mxu0 0.0
    %88 = vmatprep.subr.mxu0 0.0
    %89 = vmatpush1.msra.mxu0 0.0
    %90 = vmatprep.subr.mxu0 0.0
    %91 = vmatpush1.msra.mxu0 0.0
    %92 = vmatprep.subr.mxu0 0.0
    %93 = vmatpush1.msra.mxu0 0.0
    %94 = vmatprep.subr.mxu0 0.0
    %95 = vmatpush1.msra.mxu0 0.0
    %96 = vmatprep.subr.mxu0 0.0
    %97 = vmatpush1.msra.mxu0 0.0
    %98 = vmatprep.subr.mxu0 0.0
    %99 = vmatpush1.msra.mxu0 0.0
    %100 = vmatprep.subr.mxu0 0.0
    %101 = vmatpush1.msra.mxu0 0.0
    %102 = vmatprep.subr.mxu0 0.0
    %103 = vmatpush1.msra.mxu0 %v79
    %104 = vmatprep.subr.mxu0 0.0
    %105 = vmatpush1.msra.mxu0 %v78
    %106 = vmatprep.subr.mxu0 0.0
    %107 = vmatpush1.msra.mxu0 %v77
    %108 = vmatprep.subr.mxu0 0.0
    %109 = vmatpush1.msra.mxu0 %v76
    %110 = vmatprep.subr.mxu0 0.0
    %111 = vmatpush1.msra.mxu0 %v75
    %112 = vmatprep.subr.mxu0 0.0
    %113 = vmatpush1.msra.mxu0 %v74
    %114 = vmatprep.subr.mxu0 0.0
    %115 = vmatpush1.msra.mxu0 %v73
    %116 = vmatprep.subr.mxu0 0.0
    %117 = vmatpush1.msra.mxu0 %v72
    %118 = vmatprep.subr.mxu0 0.0
    %119 = vmatpush2.msra.mxu0 0.0
    %120 = vmatprep.subr.mxu0 0.0
    %121 = vmatpush2.msra.mxu0 0.0
    %122 = vmatprep.subr.mxu0 0.0
    %123 = vmatpush2.msra.mxu0 0.0
    %124 = vmatprep.subr.mxu0 0.0
    %125 = vmatpush2.msra.mxu0 0.0
    %126 = vmatprep.subr.mxu0 0.0
    %127 = vmatpush2.msra.mxu0 0.0
    %128 = vmatprep.subr.mxu0 0.0
    %129 = vmatpush2.msra.mxu0 0.0
    %130 = vmatprep.subr.mxu0 0.0
    %131 = vmatpush2.msra.mxu0 0.0
    %132 = vmatprep.subr.mxu0 0.0
    %133 = vmatpush2.msra.mxu0 0.0
    %134 = vmatprep.subr.mxu0 0.0
    %135 = vmatpush2.msra.mxu0 0.0
    %136 = vmatprep.subr.mxu0 0.0
    %137 = vmatpush2.msra.mxu0 0.0
    %138 = vmatprep.subr.mxu0 0.0
    %139 = vmatpush2.msra.mxu0 0.0
    %140 = vmatprep.subr.mxu0 0.0
    %141 = vmatpush2.msra.mxu0 0.0
    %142 = vmatprep.subr.mxu0 0.0
    %143 = vmatpush2.msra.mxu0 0.0
    %144 = vmatprep.subr.mxu0 0.0
    %145 = vmatpush2.msra.mxu0 0.0
    %146 = vmatprep.subr.mxu0 0.0
    %147 = vmatpush2.msra.mxu0 0.0
    %148 = vmatprep.subr.mxu0 0.0
    %149 = vmatpush2.msra.mxu0 0.0
    %150 = vmatprep.mubr.f32.mxu0 0.0
    %151 = vmatmul.mubr.f32.gmra.mxu0 %v81
    %v152 = vpop.f32.mrf.mxu0
    %v153 = vadd.f32 0.0, %v152
    %v154 = vpop.f32.mrf.mxu0
    %155 = vmatprep.mubr.f32.mxu0 0.0
    %156 = vmatmul.mubr.f32.gmra.mxu0 %v84
    %v157 = vpop.f32.mrf.mxu0
    %v158 = vadd.f32 0.0, %v157
    %v159 = vpop.f32.mrf.mxu0
    %160 = vdwg.mxu0
    %161 = vst [vmem:[#allocation7] sm:$0xff] %v153
    %162 = vst [vmem:[#allocation7 + $0x8] sm:$0xff] %v158
    // Predicated region
    $region22: #{tpu_custom_call.1} parent=1 // pred_check
      _
    $region23: #{tpu_custom_call.1} parent=1 // pred_check_branch
      %164 = sbr.rel (0) target = $region25
    $region24: #{tpu_custom_call.1} parent=1 // pred_region
      %s166 = ssub.s32 256, 256
      %167 = vsyncadd [#allocation4], %s166
      %s168 = sshll.u32 [#allocation7], 4
      %s169 = int_to_ptr.vmem [resolvable:$true] %s168
      %174 = dma.vmem_to_hbm [thread:$0]  %s169, 256, %s3, [#allocation4], 128, 128, 8
    $region25: #{tpu_custom_call.1} parent=1 // pred_fallthru
      _
    // Predicated region
    $region26: #{tpu_custom_call.1} parent=1 // pred_check
      _
    $region27: #{tpu_custom_call.1} parent=1 // pred_check_branch
      %176 = sbr.rel (0) target = $region29
    $region28: #{tpu_custom_call.1} parent=1 // pred_region
      %177 = dma.done [#allocation4], 256
    $region29: #{tpu_custom_call.1} parent=1 // pred_fallthru
      _
    %178 = vsyncpa [#allocation3], 1
    %179 = vsyncpa [#allocation6], 1
    %180 = vsyncpa [#allocation4], 1

</llo_original>
